<compile_context>
chip_gen: v7x
topology: tpu7x:2x2x1
jax: 0.10.0
libtpu: 0.0.40
codegen_flags: <defaults>
</compile_context>

<pallas_src>
import functools

import jax
import jax.numpy as jnp
from jax.experimental import pallas as pl
from jax.experimental.pallas import tpu as pltpu


# (kh0, kw0, KH, KW): placement of each branch kernel inside the 5x5 footprint.
# A KHxKW branch with padding (KH//2, KW//2) sits centered in the 5x5 "same"
# conv (padding 2), i.e. at offset (2 - KH//2, 2 - KW//2).
_BRANCH_FOOTPRINTS = {
    "hh": (2, 1, 1, 3),   # Hori_high: kernel (1,3), pad (0,1)
    "vh": (1, 2, 3, 1),   # Vert_high: kernel (3,1), pad (1,0)
    "hl": (1, 0, 3, 5),   # Hori_low : kernel (3,5), pad (1,2)
    "vl": (0, 1, 5, 3),   # Vert_low : kernel (5,3), pad (2,1)
}


def _union_taps():
    """(kh, kw) positions of the 5x5 footprint touched by any branch (21 of 25)."""
    taps = set()
    for kh0, kw0, kh, kw in _BRANCH_FOOTPRINTS.values():
        for a in range(kh):
            for b in range(kw):
                taps.add((kh0 + a, kw0 + b))
    return sorted(taps)


def _embed_5x5(w, kh0, kw0):
    kh, kw = w.shape[0], w.shape[1]
    return jnp.pad(w, ((kh0, 5 - kh0 - kh), (kw0, 5 - kw0 - kw), (0, 0), (0, 0)))


def _fold_params(params):
    """Fold 4 branch convs + 0.5 mixing + biases into one 5x5 conv (HWIO, 4*Cout)."""
    e = {k: _embed_5x5(params["w_" + k], f[0], f[1])
         for k, f in _BRANCH_FOOTPRINTS.items()}
    b = {k: params["b_" + k] for k in _BRANCH_FOOTPRINTS}
    w_comb = jnp.concatenate(
        [0.5 * (e["vh"] + e["hh"]),    # out_hh
         0.5 * (e["vl"] + e["hl"]),    # out_ll
         0.5 * (e["vh"] + e["hl"]),    # out_hl
         0.5 * (e["vl"] + e["hh"])],   # out_lh
        axis=-1)                                                  # (5,5,Cin,4*Cout)
    b_comb = jnp.concatenate(
        [0.5 * (b["vh"] + b["hh"]), 0.5 * (b["vl"] + b["hl"]),
         0.5 * (b["vh"] + b["hl"]), 0.5 * (b["vl"] + b["hh"])])   # (4*Cout,)
    return w_comb, b_comb


def mfa_kernel(x_ref, w_ref, b_ref, o_ref, *, H, W, cin, deltas, max_shift):
    """x_ref: (1, Cin, H*W + 2*max_shift) flat zero-haloed NCHW image,
    w_ref: (4*Cout, T*Cin) folded weight, b_ref: (4*Cout, 1) folded bias,
    o_ref: (1, 4*Cout, H*W)."""
    L = H * W
    xf = x_ref[0]                                   # (Cin, L + 2*max_shift)

    # Column masks replace the conv zero padding along W after flattening H*W
    # (a lane shift of +-1/+-2 wraps into the neighbouring row). Hoisted so the
    # iota/compares are built once, not per tap.
    col = jax.lax.broadcasted_iota(jnp.int32, (cin, L), 1) % W
    masks = {dw: jnp.logical_and(col + dw >= 0, col + dw < W)
             for dw in sorted({d[1] for d in deltas if d[1] != 0})}

    # im2col in VMEM: 21 lane-shifted (Cin, L) pieces -> one (T*Cin, L) slab.
    pieces = []
    for dh, dw in deltas:
        start = max_shift + dh * W + dw             # static slice start
        piece = xf[:, start:start + L]              # (Cin, L) lane shift
        if dw != 0:
            piece = jnp.where(masks[dw], piece, 0.0)
        pieces.append(piece)
    slab = jnp.concatenate(pieces, axis=0)          # (T*Cin, L)

    # Single MXU matmul: (4*Cout, T*Cin) @ (T*Cin, L) -> (4*Cout, L).
    acc = jnp.dot(w_ref[...], slab, preferred_element_type=jnp.float32)
    acc = acc + b_ref[...]                          # broadcast (4*Cout, 1)
    o_ref[0] = acc.astype(o_ref.dtype)


def mfa_conv_start(x_nchw, params):
    """Forward of MfA_Conv_start. x: (N, Cin, H, W) -> (N, 4*Cout, H, W)."""
    N, Cin, H, W = x_nchw.shape
    Cout = params["w_hh"].shape[-1]
    L = H * W
    max_shift = 2 * W + 2                           # max |dh*W + dw|

    taps = _union_taps()                            # 21 (kh, kw) positions
    deltas = tuple((kh - 2, kw - 2) for kh, kw in taps)
    T = len(taps)

    w_comb, b_comb = _fold_params(params)
    # (T, Cin, 4*Cout) -> (4*Cout, T*Cin); row order matches the slab order.
    w_sel = jnp.stack([w_comb[kh, kw] for kh, kw in taps], axis=0)
    w_t = w_sel.reshape(T * Cin, 4 * Cout).T        # (4*Cout, T*Cin)
    b_col = b_comb.reshape(4 * Cout, 1)

    # NCHW kept as-is: flatten spatial (free) + one small zero-halo pad on the
    # lane axis. No transposes before or after the kernel.
    xf = jnp.pad(x_nchw.reshape(N, Cin, L),
                 ((0, 0), (0, 0), (max_shift, max_shift)))
    Lp = L + 2 * max_shift

    kernel = functools.partial(mfa_kernel, H=H, W=W, cin=Cin,
                               deltas=deltas, max_shift=max_shift)

    out_flat = pl.pallas_call(
        kernel,
        out_shape=jax.ShapeDtypeStruct((N, 4 * Cout, L), x_nchw.dtype),
        grid_spec=pltpu.PrefetchScalarGridSpec(
            num_scalar_prefetch=0,
            grid=(N,),
            in_specs=[
                pl.BlockSpec((1, Cin, Lp), lambda n: (n, 0, 0)),
                pl.BlockSpec((4 * Cout, T * Cin), lambda n: (0, 0)),
                pl.BlockSpec((4 * Cout, 1), lambda n: (0, 0)),
            ],
            out_specs=pl.BlockSpec((1, 4 * Cout, L), lambda n: (n, 0, 0)),
        ),
        compiler_params=pltpu.CompilerParams(dimension_semantics=("parallel",)),
    )(xf, w_t, b_col)

    # (N, 4*Cout, H*W) is already NCHW-flattened; reshape is free.
    return out_flat.reshape(N, 4 * Cout, H, W)


if __name__ == "__main__":
    key = jax.random.PRNGKey(0)
    N, Cin, H, W = 2, 4, 16, 16
    Cout = 8  # each branch conv's out_channels; final output has 4*Cout channels

    ks = jax.random.split(key, 9)
    params = {
        # HWIO weights, deterministic init
        "w_hh": 0.1 * jax.random.normal(ks[0], (1, 3, Cin, Cout), jnp.float32),
        "w_vh": 0.1 * jax.random.normal(ks[1], (3, 1, Cin, Cout), jnp.float32),
        "w_hl": 0.1 * jax.random.normal(ks[2], (3, 5, Cin, Cout), jnp.float32),
        "w_vl": 0.1 * jax.random.normal(ks[3], (5, 3, Cin, Cout), jnp.float32),
        "b_hh": 0.1 * jax.random.normal(ks[4], (Cout,), jnp.float32),
        "b_vh": 0.1 * jax.random.normal(ks[5], (Cout,), jnp.float32),
        "b_hl": 0.1 * jax.random.normal(ks[6], (Cout,), jnp.float32),
        "b_vl": 0.1 * jax.random.normal(ks[7], (Cout,), jnp.float32),
    }
    x = jax.random.normal(ks[8], (N, Cin, H, W), jnp.float32)

    out = jax.block_until_ready(mfa_conv_start(x, params))
    assert out.shape == (N, 4 * Cout, H, W), out.shape

    # Pure-JAX reference (same semantics as the PyTorch forward).
    def conv_ref(xi, w, b, pad):
        o = jax.lax.conv_general_dilated(
            xi, w, window_strides=(1, 1),
            padding=((pad[0], pad[0]), (pad[1], pad[1])),
            dimension_numbers=("NCHW", "HWIO", "NCHW"))
        return o + b[None, :, None, None]

    horn_h = conv_ref(x, params["w_hh"], params["b_hh"], (0, 1))
    vert_h = conv_ref(x, params["w_vh"], params["b_vh"], (1, 0))
    horn_l = conv_ref(x, params["w_hl"], params["b_hl"], (1, 2))
    vert_l = conv_ref(x, params["w_vl"], params["b_vl"], (2, 1))
    ref = jnp.concatenate(
        [0.5 * vert_h + 0.5 * horn_h,
         0.5 * vert_l + 0.5 * horn_l,
         0.5 * vert_h + 0.5 * horn_l,
         0.5 * vert_l + 0.5 * horn_h], axis=1)

    err = float(jnp.max(jnp.abs(out - ref)))
    assert jnp.allclose(out, ref, atol=1e-4, rtol=1e-4), err
    print("KERNEL_OK")
</pallas_src>

<mosaic_0001>
module attributes {stable_mosaic.version = 11 : i64} {
  func.func @mfa_kernel(%arg0: i32, %arg1: memref<1x4x324xf32, #tpu.memory_space<vmem>>, %arg2: memref<32x84xf32, #tpu.memory_space<vmem>>, %arg3: memref<32x1xf32, #tpu.memory_space<vmem>>, %arg4: memref<1x32x256xf32, #tpu.memory_space<vmem>>) attributes {dimension_semantics = [#tpu.dimension_semantics<parallel>], iteration_bounds = array<i64: 2>, scalar_prefetch = 0 : i64, scratch_operands = 0 : i64, tpu.core_type = #tpu.core_type<tc>, window_params = [{transform_indices = @transform_0, window_bounds = array<i64: 1, 4, 324>}, {pipeline_mode = #tpu.pipeline_mode<synchronous>, transform_indices = @transform_1, window_bounds = array<i64: 32, 84>}, {pipeline_mode = #tpu.pipeline_mode<synchronous>, transform_indices = @transform_2, window_bounds = array<i64: 32, 1>}, {transform_indices = @transform_3, window_bounds = array<i64: 1, 32, 256>}]} {
    %c0 = arith.constant 0 : index
    %c0_0 = arith.constant 0 : index
    %c0_1 = arith.constant 0 : index
    %0 = vector.load %arg1[%c0, %c0_0, %c0_1] : memref<1x4x324xf32, #tpu.memory_space<vmem>>, vector<1x4x324xf32>
    %1 = vector.shape_cast %0 : vector<1x4x324xf32> to vector<4x324xf32>
    %2 = tpu.iota {dimensions = array<i32: 1>} : vector<4x256xi32>
    %c16_i32 = arith.constant 16 : i32
    %c0_i32 = arith.constant 0 : i32
    %3 = arith.cmpi eq, %c16_i32, %c0_i32 : i32
    %c1_i32 = arith.constant 1 : i32
    %4 = arith.select %3, %c1_i32, %c16_i32 : i32
    %5 = vector.broadcast %4 : i32 to vector<4x256xi32>
    %6 = arith.remsi %2, %5 : vector<4x256xi32>
    %c0_i32_2 = arith.constant 0 : i32
    %7 = vector.broadcast %c0_i32_2 : i32 to vector<4x256xi32>
    %8 = arith.cmpi ne, %6, %7 : vector<4x256xi32>
    %c0_i32_3 = arith.constant 0 : i32
    %9 = vector.broadcast %c0_i32_3 : i32 to vector<4x256xi32>
    %10 = arith.cmpi slt, %6, %9 : vector<4x256xi32>
    %c0_i32_4 = arith.constant 0 : i32
    %11 = arith.cmpi slt, %4, %c0_i32_4 : i32
    %12 = vector.broadcast %11 : i1 to vector<4x256xi1>
    %13 = vector.broadcast %12 : vector<4x256xi1> to vector<4x256xi1>
    %14 = arith.xori %10, %13 : vector<4x256xi1>
    %15 = arith.andi %14, %8 : vector<4x256xi1>
    %16 = vector.broadcast %4 : i32 to vector<4x256xi32>
    %17 = arith.addi %6, %16 : vector<4x256xi32>
    %18 = arith.select %15, %17, %6 : vector<4x256xi1>, vector<4x256xi32>
    %c-2_i32 = arith.constant -2 : i32
    %19 = vector.broadcast %c-2_i32 : i32 to vector<4x256xi32>
    %20 = arith.addi %18, %19 : vector<4x256xi32>
    %c0_i32_5 = arith.constant 0 : i32
    %21 = vector.broadcast %c0_i32_5 : i32 to vector<4x256xi32>
    %22 = arith.cmpi sge, %20, %21 : vector<4x256xi32>
    %c-2_i32_6 = arith.constant -2 : i32
    %23 = vector.broadcast %c-2_i32_6 : i32 to vector<4x256xi32>
    %24 = arith.addi %18, %23 : vector<4x256xi32>
    %c16_i32_7 = arith.constant 16 : i32
    %25 = vector.broadcast %c16_i32_7 : i32 to vector<4x256xi32>
    %26 = arith.cmpi slt, %24, %25 : vector<4x256xi32>
    %27 = arith.andi %22, %26 : vector<4x256xi1>
    %c-1_i32 = arith.constant -1 : i32
    %28 = vector.broadcast %c-1_i32 : i32 to vector<4x256xi32>
    %29 = arith.addi %18, %28 : vector<4x256xi32>
    %c0_i32_8 = arith.constant 0 : i32
    %30 = vector.broadcast %c0_i32_8 : i32 to vector<4x256xi32>
    %31 = arith.cmpi sge, %29, %30 : vector<4x256xi32>
    %c-1_i32_9 = arith.constant -1 : i32
    %32 = vector.broadcast %c-1_i32_9 : i32 to vector<4x256xi32>
    %33 = arith.addi %18, %32 : vector<4x256xi32>
    %c16_i32_10 = arith.constant 16 : i32
    %34 = vector.broadcast %c16_i32_10 : i32 to vector<4x256xi32>
    %35 = arith.cmpi slt, %33, %34 : vector<4x256xi32>
    %36 = arith.andi %31, %35 : vector<4x256xi1>
    %c1_i32_11 = arith.constant 1 : i32
    %37 = vector.broadcast %c1_i32_11 : i32 to vector<4x256xi32>
    %38 = arith.addi %18, %37 : vector<4x256xi32>
    %c0_i32_12 = arith.constant 0 : i32
    %39 = vector.broadcast %c0_i32_12 : i32 to vector<4x256xi32>
    %40 = arith.cmpi sge, %38, %39 : vector<4x256xi32>
    %c1_i32_13 = arith.constant 1 : i32
    %41 = vector.broadcast %c1_i32_13 : i32 to vector<4x256xi32>
    %42 = arith.addi %18, %41 : vector<4x256xi32>
    %c16_i32_14 = arith.constant 16 : i32
    %43 = vector.broadcast %c16_i32_14 : i32 to vector<4x256xi32>
    %44 = arith.cmpi slt, %42, %43 : vector<4x256xi32>
    %45 = arith.andi %40, %44 : vector<4x256xi1>
    %c2_i32 = arith.constant 2 : i32
    %46 = vector.broadcast %c2_i32 : i32 to vector<4x256xi32>
    %47 = arith.addi %18, %46 : vector<4x256xi32>
    %c0_i32_15 = arith.constant 0 : i32
    %48 = vector.broadcast %c0_i32_15 : i32 to vector<4x256xi32>
    %49 = arith.cmpi sge, %47, %48 : vector<4x256xi32>
    %c2_i32_16 = arith.constant 2 : i32
    %50 = vector.broadcast %c2_i32_16 : i32 to vector<4x256xi32>
    %51 = arith.addi %18, %50 : vector<4x256xi32>
    %c16_i32_17 = arith.constant 16 : i32
    %52 = vector.broadcast %c16_i32_17 : i32 to vector<4x256xi32>
    %53 = arith.cmpi slt, %51, %52 : vector<4x256xi32>
    %54 = arith.andi %49, %53 : vector<4x256xi1>
    %55 = vector.extract_strided_slice %1 {offsets = [0, 1], sizes = [4, 256], strides = [1, 1]} : vector<4x324xf32> to vector<4x256xf32>
    %cst = arith.constant 0.000000e+00 : f32
    %56 = vector.broadcast %cst : f32 to vector<4x256xf32>
    %57 = arith.select %36, %55, %56 : vector<4x256xi1>, vector<4x256xf32>
    %58 = vector.extract_strided_slice %1 {offsets = [0, 2], sizes = [4, 256], strides = [1, 1]} : vector<4x324xf32> to vector<4x256xf32>
    %59 = vector.extract_strided_slice %1 {offsets = [0, 3], sizes = [4, 256], strides = [1, 1]} : vector<4x324xf32> to vector<4x256xf32>
    %cst_18 = arith.constant 0.000000e+00 : f32
    %60 = vector.broadcast %cst_18 : f32 to vector<4x256xf32>
    %61 = arith.select %45, %59, %60 : vector<4x256xi1>, vector<4x256xf32>
    %62 = vector.extract_strided_slice %1 {offsets = [0, 16], sizes = [4, 256], strides = [1, 1]} : vector<4x324xf32> to vector<4x256xf32>
    %cst_19 = arith.constant 0.000000e+00 : f32
    %63 = vector.broadcast %cst_19 : f32 to vector<4x256xf32>
    %64 = arith.select %27, %62, %63 : vector<4x256xi1>, vector<4x256xf32>
    %65 = vector.extract_strided_slice %1 {offsets = [0, 17], sizes = [4, 256], strides = [1, 1]} : vector<4x324xf32> to vector<4x256xf32>
    %cst_20 = arith.constant 0.000000e+00 : f32
    %66 = vector.broadcast %cst_20 : f32 to vector<4x256xf32>
    %67 = arith.select %36, %65, %66 : vector<4x256xi1>, vector<4x256xf32>
    %68 = vector.extract_strided_slice %1 {offsets = [0, 18], sizes = [4, 256], strides = [1, 1]} : vector<4x324xf32> to vector<4x256xf32>
    %69 = vector.extract_strided_slice %1 {offsets = [0, 19], sizes = [4, 256], strides = [1, 1]} : vector<4x324xf32> to vector<4x256xf32>
    %cst_21 = arith.constant 0.000000e+00 : f32
    %70 = vector.broadcast %cst_21 : f32 to vector<4x256xf32>
    %71 = arith.select %45, %69, %70 : vector<4x256xi1>, vector<4x256xf32>
    %72 = vector.extract_strided_slice %1 {offsets = [0, 20], sizes = [4, 256], strides = [1, 1]} : vector<4x324xf32> to vector<4x256xf32>
    %cst_22 = arith.constant 0.000000e+00 : f32
    %73 = vector.broadcast %cst_22 : f32 to vector<4x256xf32>
    %74 = arith.select %54, %72, %73 : vector<4x256xi1>, vector<4x256xf32>
    %75 = vector.extract_strided_slice %1 {offsets = [0, 32], sizes = [4, 256], strides = [1, 1]} : vector<4x324xf32> to vector<4x256xf32>
    %cst_23 = arith.constant 0.000000e+00 : f32
    %76 = vector.broadcast %cst_23 : f32 to vector<4x256xf32>
    %77 = arith.select %27, %75, %76 : vector<4x256xi1>, vector<4x256xf32>
    %78 = vector.extract_strided_slice %1 {offsets = [0, 33], sizes = [4, 256], strides = [1, 1]} : vector<4x324xf32> to vector<4x256xf32>
    %cst_24 = arith.constant 0.000000e+00 : f32
    %79 = vector.broadcast %cst_24 : f32 to vector<4x256xf32>
    %80 = arith.select %36, %78, %79 : vector<4x256xi1>, vector<4x256xf32>
    %81 = vector.extract_strided_slice %1 {offsets = [0, 34], sizes = [4, 256], strides = [1, 1]} : vector<4x324xf32> to vector<4x256xf32>
    %82 = vector.extract_strided_slice %1 {offsets = [0, 35], sizes = [4, 256], strides = [1, 1]} : vector<4x324xf32> to vector<4x256xf32>
    %cst_25 = arith.constant 0.000000e+00 : f32
    %83 = vector.broadcast %cst_25 : f32 to vector<4x256xf32>
    %84 = arith.select %45, %82, %83 : vector<4x256xi1>, vector<4x256xf32>
    %85 = vector.extract_strided_slice %1 {offsets = [0, 36], sizes = [4, 256], strides = [1, 1]} : vector<4x324xf32> to vector<4x256xf32>
    %cst_26 = arith.constant 0.000000e+00 : f32
    %86 = vector.broadcast %cst_26 : f32 to vector<4x256xf32>
    %87 = arith.select %54, %85, %86 : vector<4x256xi1>, vector<4x256xf32>
    %88 = vector.extract_strided_slice %1 {offsets = [0, 48], sizes = [4, 256], strides = [1, 1]} : vector<4x324xf32> to vector<4x256xf32>
    %cst_27 = arith.constant 0.000000e+00 : f32
    %89 = vector.broadcast %cst_27 : f32 to vector<4x256xf32>
    %90 = arith.select %27, %88, %89 : vector<4x256xi1>, vector<4x256xf32>
    %91 = vector.extract_strided_slice %1 {offsets = [0, 49], sizes = [4, 256], strides = [1, 1]} : vector<4x324xf32> to vector<4x256xf32>
    %cst_28 = arith.constant 0.000000e+00 : f32
    %92 = vector.broadcast %cst_28 : f32 to vector<4x256xf32>
    %93 = arith.select %36, %91, %92 : vector<4x256xi1>, vector<4x256xf32>
    %94 = vector.extract_strided_slice %1 {offsets = [0, 50], sizes = [4, 256], strides = [1, 1]} : vector<4x324xf32> to vector<4x256xf32>
    %95 = vector.extract_strided_slice %1 {offsets = [0, 51], sizes = [4, 256], strides = [1, 1]} : vector<4x324xf32> to vector<4x256xf32>
    %cst_29 = arith.constant 0.000000e+00 : f32
    %96 = vector.broadcast %cst_29 : f32 to vector<4x256xf32>
    %97 = arith.select %45, %95, %96 : vector<4x256xi1>, vector<4x256xf32>
    %98 = vector.extract_strided_slice %1 {offsets = [0, 52], sizes = [4, 256], strides = [1, 1]} : vector<4x324xf32> to vector<4x256xf32>
    %cst_30 = arith.constant 0.000000e+00 : f32
    %99 = vector.broadcast %cst_30 : f32 to vector<4x256xf32>
    %100 = arith.select %54, %98, %99 : vector<4x256xi1>, vector<4x256xf32>
    %101 = vector.extract_strided_slice %1 {offsets = [0, 65], sizes = [4, 256], strides = [1, 1]} : vector<4x324xf32> to vector<4x256xf32>
    %cst_31 = arith.constant 0.000000e+00 : f32
    %102 = vector.broadcast %cst_31 : f32 to vector<4x256xf32>
    %103 = arith.select %36, %101, %102 : vector<4x256xi1>, vector<4x256xf32>
    %104 = vector.extract_strided_slice %1 {offsets = [0, 66], sizes = [4, 256], strides = [1, 1]} : vector<4x324xf32> to vector<4x256xf32>
    %105 = vector.extract_strided_slice %1 {offsets = [0, 67], sizes = [4, 256], strides = [1, 1]} : vector<4x324xf32> to vector<4x256xf32>
    %cst_32 = arith.constant 0.000000e+00 : f32
    %106 = vector.broadcast %cst_32 : f32 to vector<4x256xf32>
    %107 = arith.select %45, %105, %106 : vector<4x256xi1>, vector<4x256xf32>
    %108 = tpu.concatenate %57, %58, %61, %64, %67, %68, %71, %74, %77, %80, %81, %84, %87, %90, %93, %94 in 0 : vector<4x256xf32>, vector<4x256xf32>, vector<4x256xf32>, vector<4x256xf32>, vector<4x256xf32>, vector<4x256xf32>, vector<4x256xf32>, vector<4x256xf32>, vector<4x256xf32>, vector<4x256xf32>, vector<4x256xf32>, vector<4x256xf32>, vector<4x256xf32>, vector<4x256xf32>, vector<4x256xf32>, vector<4x256xf32> -> vector<64x256xf32>
    %109 = tpu.concatenate %97, %100, %103, %104, %107 in 0 : vector<4x256xf32>, vector<4x256xf32>, vector<4x256xf32>, vector<4x256xf32>, vector<4x256xf32> -> vector<20x256xf32>
    %110 = tpu.concatenate %108, %109 in 0 : vector<64x256xf32>, vector<20x256xf32> -> vector<84x256xf32>
    %c0_33 = arith.constant 0 : index
    %c0_34 = arith.constant 0 : index
    %111 = vector.load %arg2[%c0_33, %c0_34] : memref<32x84xf32, #tpu.memory_space<vmem>>, vector<32x84xf32>
    %cst_35 = arith.constant dense<0.000000e+00> : vector<32x256xf32>
    %112 = tpu.matmul %111, %110, %cst_35 {dimension_numbers = #tpu.dot_dimension_numbers<[1], [0], [0], [1], [0, 0, 1, 1], [], []>} : vector<32x84xf32>, vector<84x256xf32>, vector<32x256xf32> -> vector<32x256xf32>
    %c0_36 = arith.constant 0 : index
    %c0_37 = arith.constant 0 : index
    %113 = vector.load %arg3[%c0_36, %c0_37] : memref<32x1xf32, #tpu.memory_space<vmem>>, vector<32x1xf32>
    %114 = vector.broadcast %113 : vector<32x1xf32> to vector<32x256xf32>
    %115 = arith.addf %112, %114 : vector<32x256xf32>
    %c0_38 = arith.constant 0 : index
    %c0_39 = arith.constant 0 : index
    %c0_40 = arith.constant 0 : index
    %116 = vector.load %arg4[%c0_38, %c0_39, %c0_40] : memref<1x32x256xf32, #tpu.memory_space<vmem>>, vector<1x32x256xf32>
    %117 = vector.shape_cast %116 : vector<1x32x256xf32> to vector<32x256xf32>
    %118 = vector.shape_cast %115 : vector<32x256xf32> to vector<1x32x256xf32>
    tpu.vector_store %arg4[%c0_38, %c0_39, %c0_40], %118 {strides = array<i32>} : memref<1x32x256xf32, #tpu.memory_space<vmem>>, vector<1x32x256xf32>,
    return
  }
  func.func @transform_0(%arg0: i32) -> (i32, i32, i32) {
    %c0_i32 = arith.constant 0 : i32
    %c0_i32_0 = arith.constant 0 : i32
    %c0_i32_1 = arith.constant 0 : i32
    return %arg0, %c0_i32, %c0_i32_0 : i32, i32, i32
  }
  func.func @transform_1(%arg0: i32) -> (i32, i32) {
    %c0_i32 = arith.constant 0 : i32
    %c0_i32_0 = arith.constant 0 : i32
    %c0_i32_1 = arith.constant 0 : i32
    return %c0_i32, %c0_i32_0 : i32, i32
  }
  func.func @transform_2(%arg0: i32) -> (i32, i32) {
    %c0_i32 = arith.constant 0 : i32
    %c0_i32_0 = arith.constant 0 : i32
    %c0_i32_1 = arith.constant 0 : i32
    return %c0_i32, %c0_i32_0 : i32, i32
  }
  func.func @transform_3(%arg0: i32) -> (i32, i32, i32) {
    %c0_i32 = arith.constant 0 : i32
    %c0_i32_0 = arith.constant 0 : i32
    %c0_i32_1 = arith.constant 0 : i32
    return %arg0, %c0_i32, %c0_i32_0 : i32, i32, i32
  }
}

</mosaic_0001>

<llo_original>
// kernel: tpu_custom_call.1
$region0: #{tpu_custom_call.1}
  #allocation0 [shape = 'u32[]', space=smem, size = 0x4, offset = 0x4, fixed_abs, tag = 'smem constant byte address 0x4 - core index']
  #allocation1 [shape = 'u32[144,128]{1,0:T(1,128)}', space=vmem, size = 0x12000, scoped, tag = 'internal scratch']
  %s0 = inlined_call_operand.hbm [shape: f32[2,4,324], index: 0, kind: input, shape index: {}]
  %s1 = inlined_call_operand.vmem [shape: f32[32,84], index: 1, kind: input, shape index: {}]
  %s2 = inlined_call_operand.vmem [shape: f32[32,1], index: 2, kind: input, shape index: {}]
  %s3 = inlined_call_operand.hbm [shape: f32[2,32,256], index: 3, kind: output, shape index: {}]
  %s4 = sld [smem:[#allocation0]]
  $region49: #{tpu_custom_call.1} parent=0
    _
  %s6 = ssub.s32 1, %s4
  %s7 = scalar_select 0, %s6, %s4
  $region1: #{tpu_custom_call.1} parent=0
    #allocation2 [shape = 'u8[12288]{0}', space=vmem, size = 0x3000, scoped, tag = 'input window, operand 0']
    #allocation3 [shape = 's32[2]{0}', space=sflag, size = 0x8, scoped, tag = 'scoped memory for tpu_custom_call.1']
    #allocation4 [shape = 's32[2]{0}', space=sflag, size = 0x8, scoped, tag = 'scoped memory for tpu_custom_call.1']
    #allocation5 [shape = 'u8[65536]{0}', space=vmem, size = 0x10000, scoped, tag = 'output window, operand 0']
    %8 = vsyncpa [#allocation3], 0
    %s9 = scalar_lea.sflag [#allocation3], 1
    %10 = vsyncpa %s9, 0
    %11 = vsyncpa [#allocation4], 0
    %s12 = scalar_lea.sflag [#allocation4], 1
    %13 = vsyncpa %s12, 0
    loop: start=0, step=1, limit=4
    $region2: #{tpu_custom_call.1} parent=1 // loop_pre_header
      _
    $region3: #{tpu_custom_call.1} parent=1 // loop_header
      %s15 = sphi 0, %s19
      %p16 = scmp.ge.s32.totalorder %s15, 4
      %s25 = sphi 0, %s27
      %s28 = sphi 0, %s25
      %s29 = sphi 0, %s28
      %s45 = sphi 0, %s29
      %s49 = sphi 0, %s49
      %s51 = sphi 0, %s49
      %s52 = sphi 0, %s51
      %s66 = sphi 0, %s52
      %s70 = sphi 0, %s70
      %s72 = sphi 0, %s70
      %s73 = sphi 0, %s72
      %s87 = sphi 0, %s73
      %s93 = sphi 0, %s95
      %s96 = sphi 0, %s93
      %s97 = sphi 0, %s96
      %s113 = sphi 0, %s97
    $region4: #{tpu_custom_call.1} parent=1 // loop_header_branch
      %18 = sbr.rel (%p16) target = $region8
    $region5: #{tpu_custom_call.1} parent=1 // loop_body
      %s20 = ssub.s32 %s15, 1
      %s21 = ssub.s32 %s15, 2
      %s22 = sadd.s32 %s15, 1
      %s23 = ssub.s32 %s15, %s22
      %p24 = scmp.eq.s32.totalorder %s23, 0
      %s26 = sadd.s32 %s25, 1
      %s27 = scalar_select %p24, %s25, %s26
      %p30 = pneg %p24
      %p31 = scmp.eq.s32.totalorder %s15, 1
      %p32 = por %p30, %p31
      %p33 = scmp.ne.s32.totalorder %s25, %s28
      %p34 = scmp.eq.s32.totalorder %s15, 0
      %p35 = por %p33, %p34
      %p36 = scmp.ne.s32.totalorder %s25, %s28
      %p37 = scmp.eq.s32.totalorder %s20, 1
      %p38 = por %p36, %p37
      %p39 = scmp.ne.s32.totalorder %s28, %s29
      %p40 = scmp.eq.s32.totalorder %s20, 0
      %p41 = por %p39, %p40
      %p42 = scmp.ne.s32.totalorder %s28, %s29
      %p43 = scmp.eq.s32.totalorder %s21, 1
      %p44 = por %p42, %p43
      %p46 = scmp.ne.s32.totalorder %s29, %s45
      %p47 = scmp.eq.s32.totalorder %s21, 0
      %p48 = por %p46, %p47
      %s50 = sadd.s32 %s49, 1
      %p53 = scmp.eq.s32.totalorder %s15, 1
      %p54 = scmp.ne.s32.totalorder %s49, %s51
      %p55 = scmp.eq.s32.totalorder %s15, 0
      %p56 = por %p54, %p55
      %p57 = scmp.ne.s32.totalorder %s49, %s51
      %p58 = scmp.eq.s32.totalorder %s20, 1
      %p59 = por %p57, %p58
      %p60 = scmp.ne.s32.totalorder %s51, %s52
      %p61 = scmp.eq.s32.totalorder %s20, 0
      %p62 = por %p60, %p61
      %p63 = scmp.ne.s32.totalorder %s51, %s52
      %p64 = scmp.eq.s32.totalorder %s21, 1
      %p65 = por %p63, %p64
      %p67 = scmp.ne.s32.totalorder %s52, %s66
      %p68 = scmp.eq.s32.totalorder %s21, 0
      %p69 = por %p67, %p68
      %s71 = sadd.s32 %s70, 1
      %p74 = scmp.eq.s32.totalorder %s15, 1
      %p75 = scmp.ne.s32.totalorder %s70, %s72
      %p76 = scmp.eq.s32.totalorder %s15, 0
      %p77 = por %p75, %p76
      %p78 = scmp.ne.s32.totalorder %s70, %s72
      %p79 = scmp.eq.s32.totalorder %s20, 1
      %p80 = por %p78, %p79
      %p81 = scmp.ne.s32.totalorder %s72, %s73
      %p82 = scmp.eq.s32.totalorder %s20, 0
      %p83 = por %p81, %p82
      %p84 = scmp.ne.s32.totalorder %s72, %s73
      %p85 = scmp.eq.s32.totalorder %s21, 1
      %p86 = por %p84, %p85
      %p88 = scmp.ne.s32.totalorder %s73, %s87
      %p89 = scmp.eq.s32.totalorder %s21, 0
      %p90 = por %p88, %p89
      %s91 = ssub.s32 %s15, %s22
      %p92 = scmp.eq.s32.totalorder %s91, 0
      %s94 = sadd.s32 %s93, 1
      %s95 = scalar_select %p92, %s93, %s94
      %p98 = pneg %p92
      %p99 = scmp.eq.s32.totalorder %s15, 1
      %p100 = por %p98, %p99
      %p101 = scmp.ne.s32.totalorder %s93, %s96
      %p102 = scmp.eq.s32.totalorder %s15, 0
      %p103 = por %p101, %p102
      %p104 = scmp.ne.s32.totalorder %s93, %s96
      %p105 = scmp.eq.s32.totalorder %s20, 1
      %p106 = por %p104, %p105
      %p107 = scmp.ne.s32.totalorder %s96, %s97
      %p108 = scmp.eq.s32.totalorder %s20, 0
      %p109 = por %p107, %p108
      %p110 = scmp.ne.s32.totalorder %s96, %s97
      %p111 = scmp.eq.s32.totalorder %s21, 1
      %p112 = por %p110, %p111
      %p114 = scmp.ne.s32.totalorder %s97, %s113
      %p115 = scmp.eq.s32.totalorder %s21, 0
      %p116 = por %p114, %p115
      %p117 = scmp.le.s32.totalorder 1, %s15
      %p118 = scmp.lt.s32.totalorder %s15, 3
      %p119 = pnand %p117, %p118
      %p120 = pneg %p119
      // Predicated region
      $region9: #{tpu_custom_call.1} parent=5 // pred_check
        _
      $region10: #{tpu_custom_call.1} parent=5 // pred_check_branch
        %122 = sbr.rel (%p119) target = $region12
      $region11: #{tpu_custom_call.1} parent=5 // pred_region
        %s123 = ssub.s32 %s15, 1
        // Predicated region
        $region13: #{tpu_custom_call.1} parent=11 // pred_check
          %p124 = pneg %p62
        $region14: #{tpu_custom_call.1} parent=11 // pred_check_branch
          %126 = sbr.rel (%p124) target = $region16
        $region15: #{tpu_custom_call.1} parent=11 // pred_region
          _
        $region16: #{tpu_custom_call.1} parent=11 // pred_fallthru
          _
        // Predicated region
        $region17: #{tpu_custom_call.1} parent=11 // pred_check
          %p127 = pneg %p83
        $region18: #{tpu_custom_call.1} parent=11 // pred_check_branch
          %129 = sbr.rel (%p127) target = $region20
        $region19: #{tpu_custom_call.1} parent=11 // pred_region
          _
        $region20: #{tpu_custom_call.1} parent=11 // pred_fallthru
          _
      $region12: #{tpu_custom_call.1} parent=5 // pred_fallthru
        _
      %p130 = scmp.lt.s32.totalorder %s15, 2
      // Predicated region
      $region21: #{tpu_custom_call.1} parent=5 // pred_check
        %p131 = pneg %p130
      $region22: #{tpu_custom_call.1} parent=5 // pred_check_branch
        %133 = sbr.rel (%p131) target = $region24
      $region23: #{tpu_custom_call.1} parent=5 // pred_region
        // Predicated region
        $region25: #{tpu_custom_call.1} parent=23 // pred_check
          %p134 = pneg %p35
        $region26: #{tpu_custom_call.1} parent=23 // pred_check_branch
          %136 = sbr.rel (%p134) target = $region28
        $region27: #{tpu_custom_call.1} parent=23 // pred_region
          %s137 = sand.u32 %s25, 1
          %s138 = scalar_lea.sflag [#allocation3], %s137
          %s139 = sand.u32 %s25, 1
          %s140 = smul.addr %s139, 12
          %s141 = scalar_lea.vmem [#allocation2], %s140
          %s143 = ssub.s32 192, 192
          %144 = vsyncadd %s138, %s143
          %s145 = smul.addr %s15, 3
          %s146 = smul.addr %s145, 64
          %s147 = scalar_lea.hbm %s0, %s146
          %s149 = sshll.u32 %s141, 4
          %s150 = int_to_ptr.vmem [resolvable:$true] %s149
          %152 = dma.hbm_to_vmem [thread:$0]  %s147, 192, %s150, %s138
        $region28: #{tpu_custom_call.1} parent=23 // pred_fallthru
          _
      $region24: #{tpu_custom_call.1} parent=5 // pred_fallthru
        _
      %p153 = scmp.le.s32.totalorder 1, %s15
      %p154 = scmp.lt.s32.totalorder %s15, 3
      %p155 = pnand %p153, %p154
      %p156 = pneg %p155
      // Predicated region
      $region29: #{tpu_custom_call.1} parent=5 // pred_check
        _
      $region30: #{tpu_custom_call.1} parent=5 // pred_check_branch
        %158 = sbr.rel (%p155) target = $region32
      $region31: #{tpu_custom_call.1} parent=5 // pred_region
        %s159 = ssub.s32 %s15, 1
        %s160 = sand.u32 %s28, 1
        %s161 = scalar_lea.sflag [#allocation3], %s160
        %s162 = sand.u32 %s28, 1
        %s163 = smul.addr %s162, 12
        %s164 = scalar_lea.vmem [#allocation2], %s163
        // Predicated region
        $region33: #{tpu_custom_call.1} parent=31 // pred_check
          %p165 = pneg %p41
        $region34: #{tpu_custom_call.1} parent=31 // pred_check_branch
          %167 = sbr.rel (%p165) target = $region36
        $region35: #{tpu_custom_call.1} parent=31 // pred_region
          %168 = dma.done %s161, 192
        $region36: #{tpu_custom_call.1} parent=31 // pred_fallthru
          _
        %s169 = sand.u32 %s28, 1
        %s170 = scalar_lea.sflag [#allocation3], %s169
        %s171 = sand.u32 %s28, 1
        %s172 = smul.addr %s171, 12
        %s173 = scalar_lea.vmem [#allocation2], %s172
        %p174 = pneg %p41
        %p175 = pneg %p38
        %p176 = pneg %p62
        %p177 = pneg %p59
        %p178 = pneg %p83
        %p179 = pneg %p80
        %p180 = pneg %p109
        %p181 = pneg %p106
        %s182 = sand.u32 %s96, 1
        %s183 = scalar_lea.sflag [#allocation4], %s182
        %s184 = sand.u32 %s96, 1
        %s185 = smul.addr %s184, 64
        %s186 = scalar_lea.vmem [#allocation5], %s185
        %v187 = vld [vmem:[%s164] sm:$0xff]
        %v188 = vld [vmem:[%s164 + $0x8] sm:$0xf]
        %v189 = vlaneseq
        %v190 = vand.u32 %v189, 127
        %v191 = vadd.s32 %v190, 128
        %vm192 = vcmp.lt.s32.totalorder %v190, 0
        %v193 = vsub.s32 0, %v190
        %v194 = vsel %vm192, %v193, %v190
        %v195 = vshrl.u32 %v194, 4
        %v196 = vand.u32 %v194, 15
        %v197 = vsub.s32 0, %v196
        %v198 = vsel %vm192, %v197, %v196
        %vm199 = vcmp.lt.s32.totalorder %v191, 0
        %v200 = vsub.s32 0, %v191
        %v201 = vsel %vm199, %v200, %v191
        %v202 = vshrl.u32 %v201, 4
        %v203 = vand.u32 %v201, 15
        %v204 = vsub.s32 0, %v203
        %v205 = vsel %vm199, %v204, %v203
        %vm206 = vcmp.ne.s32.totalorder %v198, 0
        %vm207 = vcmp.ne.s32.totalorder %v205, 0
        %vm208 = vcmp.lt.s32.totalorder %v198, 0
        %vm209 = vcmp.lt.s32.totalorder %v205, 0
        %vm210 = vmand %vm208, %vm206
        %vm211 = vmand %vm209, %vm207
        %v212 = vadd.s32 %v198, 16
        %v213 = vadd.s32 %v205, 16
        %v214 = vsel %vm210, %v212, %v198
        %v215 = vsel %vm211, %v213, %v205
        %v216 = vadd.s32 %v214, 4294967294
        %v217 = vadd.s32 %v215, 4294967294
        %vm218 = vcmp.ge.s32.totalorder %v216, 0
        %vm219 = vcmp.ge.s32.totalorder %v217, 0
        %vm220 = vcmp.lt.s32.totalorder %v216, 16
        %vm221 = vcmp.lt.s32.totalorder %v217, 16
        %vm222 = vmand %vm218, %vm220
        %vm223 = vmand %vm219, %vm221
        %v224 = vadd.s32 %v214, 4294967295
        %v225 = vadd.s32 %v215, 4294967295
        %vm226 = vcmp.ge.s32.totalorder %v224, 0
        %vm227 = vcmp.ge.s32.totalorder %v225, 0
        %vm228 = vcmp.lt.s32.totalorder %v224, 16
        %vm229 = vcmp.lt.s32.totalorder %v225, 16
        %vm230 = vmand %vm226, %vm228
        %vm231 = vmand %vm227, %vm229
        %v232 = vadd.s32 %v214, 1
        %v233 = vadd.s32 %v215, 1
        %vm234 = vcmp.ge.s32.totalorder %v232, 0
        %vm235 = vcmp.ge.s32.totalorder %v233, 0
        %vm236 = vcmp.lt.s32.totalorder %v232, 16
        %vm237 = vcmp.lt.s32.totalorder %v233, 16
        %vm238 = vmand %vm234, %vm236
        %vm239 = vmand %vm235, %vm237
        %v240 = vadd.s32 %v214, 2
        %v241 = vadd.s32 %v215, 2
        %vm242 = vcmp.ge.s32.totalorder %v240, 0
        %vm243 = vcmp.ge.s32.totalorder %v241, 0
        %vm244 = vcmp.lt.s32.totalorder %v240, 16
        %vm245 = vcmp.lt.s32.totalorder %v241, 16
        %vm246 = vmand %vm242, %vm244
        %vm247 = vmand %vm243, %vm245
        %v250 = vcombine.high %v187, %v187
        %251 = vrot.lane.b32.xlu0 %v187, 127
        %v252 = vpop.permute.xlu0 %251
        %253 = vrot.lane.b32.xlu0 %v250, 127
        %v254 = vpop.permute.xlu0 %253
        %255 = vrot.lane.b32.xlu0 %v188, 127
        %v256 = vpop.permute.xlu0 %255
        %vm257 = vcmask 1039360
        %v258 = vsel %vm257, %v252, %v254
        %v259 = vsel %vm257, %v254, %v256
        %v262 = vsel %vm230, %v258, 0.0
        %v263 = vsel %vm231, %v259, 0.0
        %264 = vrot.lane.b32.xlu0 %v187, 125
        %v265 = vpop.permute.xlu0 %264
        %266 = vrot.lane.b32.xlu0 %v250, 125
        %v267 = vpop.permute.xlu0 %266
        %268 = vrot.lane.b32.xlu0 %v188, 125
        %v269 = vpop.permute.xlu0 %268
        %vm270 = vcmask 1022976
        %v271 = vsel %vm270, %v265, %v267
        %v272 = vsel %vm270, %v267, %v269
        %v275 = vsel %vm238, %v271, 0.0
        %v276 = vsel %vm239, %v272, 0.0
        %277 = vrot.lane.b32.xlu0 %v187, 112
        %v278 = vpop.permute.xlu0 %277
        %279 = vrot.lane.b32.xlu0 %v250, 112
        %v280 = vpop.permute.xlu0 %279
        %281 = vrot.lane.b32.xlu0 %v188, 112
        %v282 = vpop.permute.xlu0 %281
        %vm283 = vcmask 916480
        %v284 = vsel %vm283, %v278, %v280
        %v285 = vsel %vm283, %v280, %v282
        %v288 = vsel %vm222, %v284, 0.0
        %v289 = vsel %vm223, %v285, 0.0
        %290 = vrot.lane.b32.xlu0 %v187, 111
        %v291 = vpop.permute.xlu0 %290
        %292 = vrot.lane.b32.xlu0 %v250, 111
        %v293 = vpop.permute.xlu0 %292
        %294 = vrot.lane.b32.xlu0 %v188, 111
        %v295 = vpop.permute.xlu0 %294
        %vm296 = vcmask 908288
        %v297 = vsel %vm296, %v291, %v293
        %v298 = vsel %vm296, %v293, %v295
        %v301 = vsel %vm230, %v297, 0.0
        %v302 = vsel %vm231, %v298, 0.0
        %303 = vrot.lane.b32.xlu0 %v187, 109
        %v304 = vpop.permute.xlu0 %303
        %305 = vrot.lane.b32.xlu0 %v250, 109
        %v306 = vpop.permute.xlu0 %305
        %307 = vrot.lane.b32.xlu0 %v188, 109
        %v308 = vpop.permute.xlu0 %307
        %vm309 = vcmask 891904
        %v310 = vsel %vm309, %v304, %v306
        %v311 = vsel %vm309, %v306, %v308
        %v314 = vsel %vm238, %v310, 0.0
        %v315 = vsel %vm239, %v311, 0.0
        %316 = vrot.lane.b32.xlu0 %v187, 108
        %v317 = vpop.permute.xlu0 %316
        %318 = vrot.lane.b32.xlu0 %v250, 108
        %v319 = vpop.permute.xlu0 %318
        %320 = vrot.lane.b32.xlu0 %v188, 108
        %v321 = vpop.permute.xlu0 %320
        %vm322 = vcmask 883712
        %v323 = vsel %vm322, %v317, %v319
        %v324 = vsel %vm322, %v319, %v321
        %v327 = vsel %vm246, %v323, 0.0
        %v328 = vsel %vm247, %v324, 0.0
        %329 = vrot.lane.b32.xlu0 %v187, 96
        %v330 = vpop.permute.xlu0 %329
        %331 = vrot.lane.b32.xlu0 %v250, 96
        %v332 = vpop.permute.xlu0 %331
        %333 = vrot.lane.b32.xlu0 %v188, 96
        %v334 = vpop.permute.xlu0 %333
        %vm335 = vcmask 785408
        %v336 = vsel %vm335, %v330, %v332
        %v337 = vsel %vm335, %v332, %v334
        %v340 = vsel %vm222, %v336, 0.0
        %v341 = vsel %vm223, %v337, 0.0
        %342 = vrot.lane.b32.xlu0 %v187, 95
        %v343 = vpop.permute.xlu0 %342
        %344 = vrot.lane.b32.xlu0 %v250, 95
        %v345 = vpop.permute.xlu0 %344
        %346 = vrot.lane.b32.xlu0 %v188, 95
        %v347 = vpop.permute.xlu0 %346
        %vm348 = vcmask 777216
        %v349 = vsel %vm348, %v343, %v345
        %v350 = vsel %vm348, %v345, %v347
        %v353 = vsel %vm230, %v349, 0.0
        %v354 = vsel %vm231, %v350, 0.0
        %355 = vrot.lane.b32.xlu0 %v187, 93
        %v356 = vpop.permute.xlu0 %355
        %357 = vrot.lane.b32.xlu0 %v250, 93
        %v358 = vpop.permute.xlu0 %357
        %359 = vrot.lane.b32.xlu0 %v188, 93
        %v360 = vpop.permute.xlu0 %359
        %vm361 = vcmask 760832
        %v362 = vsel %vm361, %v356, %v358
        %v363 = vsel %vm361, %v358, %v360
        %v366 = vsel %vm238, %v362, 0.0
        %v367 = vsel %vm239, %v363, 0.0
        %368 = vrot.lane.b32.xlu0 %v187, 92
        %v369 = vpop.permute.xlu0 %368
        %370 = vrot.lane.b32.xlu0 %v250, 92
        %v371 = vpop.permute.xlu0 %370
        %372 = vrot.lane.b32.xlu0 %v188, 92
        %v373 = vpop.permute.xlu0 %372
        %vm374 = vcmask 752640
        %v375 = vsel %vm374, %v369, %v371
        %v376 = vsel %vm374, %v371, %v373
        %v379 = vsel %vm246, %v375, 0.0
        %v380 = vsel %vm247, %v376, 0.0
        %381 = vrot.lane.b32.xlu0 %v187, 80
        %v382 = vpop.permute.xlu0 %381
        %383 = vrot.lane.b32.xlu0 %v250, 80
        %v384 = vpop.permute.xlu0 %383
        %385 = vrot.lane.b32.xlu0 %v188, 80
        %v386 = vpop.permute.xlu0 %385
        %vm387 = vcmask 654336
        %v388 = vsel %vm387, %v382, %v384
        %v389 = vsel %vm387, %v384, %v386
        %v392 = vsel %vm222, %v388, 0.0
        %v393 = vsel %vm223, %v389, 0.0
        %394 = vrot.lane.b32.xlu0 %v187, 79
        %v395 = vpop.permute.xlu0 %394
        %396 = vrot.lane.b32.xlu0 %v250, 79
        %v397 = vpop.permute.xlu0 %396
        %398 = vrot.lane.b32.xlu0 %v188, 79
        %v399 = vpop.permute.xlu0 %398
        %vm400 = vcmask 646144
        %v401 = vsel %vm400, %v395, %v397
        %v402 = vsel %vm400, %v397, %v399
        %v405 = vsel %vm230, %v401, 0.0
        %v406 = vsel %vm231, %v402, 0.0
        %407 = vrot.lane.b32.xlu0 %v187, 77
        %v408 = vpop.permute.xlu0 %407
        %409 = vrot.lane.b32.xlu0 %v250, 77
        %v410 = vpop.permute.xlu0 %409
        %411 = vrot.lane.b32.xlu0 %v188, 77
        %v412 = vpop.permute.xlu0 %411
        %vm413 = vcmask 629760
        %v414 = vsel %vm413, %v408, %v410
        %v415 = vsel %vm413, %v410, %v412
        %v418 = vsel %vm238, %v414, 0.0
        %v419 = vsel %vm239, %v415, 0.0
        %420 = vrot.lane.b32.xlu0 %v187, 76
        %v421 = vpop.permute.xlu0 %420
        %422 = vrot.lane.b32.xlu0 %v250, 76
        %v423 = vpop.permute.xlu0 %422
        %424 = vrot.lane.b32.xlu0 %v188, 76
        %v425 = vpop.permute.xlu0 %424
        %vm426 = vcmask 621568
        %v427 = vsel %vm426, %v421, %v423
        %v428 = vsel %vm426, %v423, %v425
        %v431 = vsel %vm246, %v427, 0.0
        %v432 = vsel %vm247, %v428, 0.0
        %433 = vrot.lane.b32.xlu0 %v187, 63
        %v434 = vpop.permute.xlu0 %433
        %435 = vrot.lane.b32.xlu0 %v250, 63
        %v436 = vpop.permute.xlu0 %435
        %437 = vrot.lane.b32.xlu0 %v188, 63
        %v438 = vpop.permute.xlu0 %437
        %vm439 = vcmask 515072
        %v440 = vsel %vm439, %v434, %v436
        %v441 = vsel %vm439, %v436, %v438
        %v444 = vsel %vm230, %v440, 0.0
        %v445 = vsel %vm231, %v441, 0.0
        %446 = vrot.lane.b32.xlu0 %v187, 61
        %v447 = vpop.permute.xlu0 %446
        %448 = vrot.lane.b32.xlu0 %v250, 61
        %v449 = vpop.permute.xlu0 %448
        %450 = vrot.lane.b32.xlu0 %v188, 61
        %v451 = vpop.permute.xlu0 %450
        %vm452 = vcmask 498688
        %v453 = vsel %vm452, %v447, %v449
        %v454 = vsel %vm452, %v449, %v451
        %v457 = vsel %vm238, %v453, 0.0
        %v458 = vsel %vm239, %v454, 0.0
        %v459 = vcombine.low %v187, %v187
        %v460 = vcombine.low %v188, %v188
        %461 = vrot.lane.b32.xlu0 %v459, 126
        %v462 = vpop.permute.xlu0 %461
        %463 = vrot.lane.b32.xlu0 %v187, 126
        %v464 = vpop.permute.xlu0 %463
        %465 = vrot.lane.b32.xlu0 %v460, 126
        %v466 = vpop.permute.xlu0 %465
        %vm467 = vcmask 1031168
        %v468 = vsel %vm467, %v462, %v464
        %v469 = vsel %vm467, %v464, %v466
        %v474 = vrot.slane %v288, 4
        %v475 = vrot.slane %v289, 4
        %478 = vrot.lane.b32.xlu0 %v459, 110
        %v479 = vpop.permute.xlu0 %478
        %480 = vrot.lane.b32.xlu0 %v187, 110
        %v481 = vpop.permute.xlu0 %480
        %482 = vrot.lane.b32.xlu0 %v460, 110
        %v483 = vpop.permute.xlu0 %482
        %vm484 = vcmask 900096
        %v485 = vsel %vm484, %v479, %v481
        %v486 = vsel %vm484, %v481, %v483
        %v491 = vrot.slane %v327, 4
        %v492 = vrot.slane %v328, 4
        %v497 = vrot.slane %v353, 4
        %v498 = vrot.slane %v354, 4
        %501 = vrot.lane.b32.xlu0 %v187, 94
        %v502 = vpop.permute.xlu0 %501
        %503 = vrot.lane.b32.xlu0 %v250, 94
        %v504 = vpop.permute.xlu0 %503
        %505 = vrot.lane.b32.xlu0 %v188, 94
        %v506 = vpop.permute.xlu0 %505
        %vm507 = vcmask 769024
        %v508 = vsel %vm507, %v502, %v504
        %v509 = vsel %vm507, %v504, %v506
        %v514 = vrot.slane %v366, 4
        %v515 = vrot.slane %v367, 4
        %v520 = vrot.slane %v392, 4
        %v521 = vrot.slane %v393, 4
        %524 = vrot.lane.b32.xlu0 %v459, 78
        %v525 = vpop.permute.xlu0 %524
        %526 = vrot.lane.b32.xlu0 %v187, 78
        %v527 = vpop.permute.xlu0 %526
        %528 = vrot.lane.b32.xlu0 %v460, 78
        %v529 = vpop.permute.xlu0 %528
        %vm530 = vcmask 637952
        %v531 = vsel %vm530, %v525, %v527
        %v532 = vsel %vm530, %v527, %v529
        %vm535 = vcmask 1043456
        %v536 = vsel %vm535, %v262, %v468
        %v537 = vsel %vm535, %v263, %v469
        %v538 = vsel %vm535, %v275, %v474
        %v539 = vsel %vm535, %v276, %v475
        %v540 = vsel %vm535, %v301, %v485
        %v541 = vsel %vm535, %v302, %v486
        %v542 = vsel %vm535, %v314, %v491
        %v543 = vsel %vm535, %v315, %v492
        %v544 = vsel %vm535, %v340, %v497
        %v545 = vsel %vm535, %v341, %v498
        %v546 = vsel %vm535, %v508, %v514
        %v547 = vsel %vm535, %v509, %v515
        %v548 = vsel %vm535, %v379, %v520
        %v549 = vsel %vm535, %v380, %v521
        %v550 = vsel %vm535, %v405, %v531
        %v551 = vsel %vm535, %v406, %v532
        %v554 = vrot.slane %v431, 4
        %v555 = vrot.slane %v432, 4
        %558 = vrot.lane.b32.xlu0 %v459, 62
        %v559 = vpop.permute.xlu0 %558
        %560 = vrot.lane.b32.xlu0 %v187, 62
        %v561 = vpop.permute.xlu0 %560
        %562 = vrot.lane.b32.xlu0 %v460, 62
        %v563 = vpop.permute.xlu0 %562
        %vm564 = vcmask 506880
        %v565 = vsel %vm564, %v559, %v561
        %v566 = vsel %vm564, %v561, %v563
        %v569 = vsel %vm535, %v418, %v554
        %v570 = vsel %vm535, %v419, %v555
        %v571 = vsel %vm535, %v444, %v565
        %v572 = vsel %vm535, %v445, %v566
        %v573 = vld [vmem:[%s1] sm:$0xff]
        %v574 = vld [vmem:[%s1 + $0x8] sm:$0xff]
        %v575 = vld [vmem:[%s1 + $0x10] sm:$0xff]
        %v576 = vld [vmem:[%s1 + $0x18] sm:$0xff]
        %v577 = vld [vmem:[%s2] sm:$0xff]
        %v578 = vld [vmem:[%s2 + $0x8] sm:$0xff]
        %v579 = vld [vmem:[%s2 + $0x10] sm:$0xff]
        %v580 = vld [vmem:[%s2 + $0x18] sm:$0xff]
        %582 = vset.pattern.permute.xlu0 0
        %583 = vperm.xlu0 %582, %v577
        %v584 = vpop.permute.xlu0 %583
        %587 = vset.pattern.permute.xlu0 0
        %588 = vperm.xlu0 %587, %v578
        %v589 = vpop.permute.xlu0 %588
        %592 = vset.pattern.permute.xlu0 0
        %593 = vperm.xlu0 %592, %v579
        %v594 = vpop.permute.xlu0 %593
        %597 = vset.pattern.permute.xlu0 0
        %598 = vperm.xlu0 %597, %v580
        %v599 = vpop.permute.xlu0 %598
        %vm601 = vcmask 687104
        %v603 = vsel %vm601, %v573, 0
        %v606 = vsel %vm601, %v574, 0
        %v609 = vsel %vm601, %v575, 0
        %v612 = vsel %vm601, %v576, 0
        %v615 = vsel %vm535, %v457, 0
        %v618 = vsel %vm535, %v458, 0
        %620 = vmatprep.subr.mxu0 %v537
        %621 = vmatpush1.msra.mxu0 %v536
        %622 = vmatprep.subr.mxu0 %v539
        %623 = vmatpush1.msra.mxu0 %v538
        %624 = vmatprep.subr.mxu0 %v541
        %625 = vmatpush1.msra.mxu0 %v540
        %626 = vmatprep.subr.mxu0 %v543
        %627 = vmatpush1.msra.mxu0 %v542
        %628 = vmatprep.subr.mxu0 %v545
        %629 = vmatpush1.msra.mxu0 %v544
        %630 = vmatprep.subr.mxu0 %v547
        %631 = vmatpush1.msra.mxu0 %v546
        %632 = vmatprep.subr.mxu0 %v549
        %633 = vmatpush1.msra.mxu0 %v548
        %634 = vmatprep.subr.mxu0 %v551
        %635 = vmatpush1.msra.mxu0 %v550
        %636 = vmatprep.subr.mxu0 %v570
        %637 = vmatpush1.msra.mxu0 %v569
        %638 = vmatprep.subr.mxu0 %v572
        %639 = vmatpush1.msra.mxu0 %v571
        %640 = vmatprep.subr.mxu0 %v618
        %641 = vmatpush1.msra.mxu0 %v615
        %642 = vmatprep.subr.mxu0 0.0
        %643 = vmatpush1.msra.mxu0 0.0
        %644 = vmatprep.subr.mxu0 0.0
        %645 = vmatpush1.msra.mxu0 0.0
        %646 = vmatprep.subr.mxu0 0.0
        %647 = vmatpush1.msra.mxu0 0.0
        %648 = vmatprep.subr.mxu0 0.0
        %649 = vmatpush1.msra.mxu0 0.0
        %650 = vmatprep.subr.mxu0 0.0
        %651 = vmatpush1.msra.mxu0 0.0
        %652 = vmatprep.subr.mxu0 0.0
        %653 = vmatpush1.msra.mxu0 0.0
        %654 = vmatprep.subr.mxu0 0.0
        %655 = vmatpush1.msra.mxu0 0.0
        %656 = vmatprep.subr.mxu0 0.0
        %657 = vmatpush1.msra.mxu0 0.0
        %658 = vmatprep.subr.mxu0 0.0
        %659 = vmatpush1.msra.mxu0 0.0
        %660 = vmatprep.subr.mxu0 0.0
        %661 = vmatpush1.msra.mxu0 0.0
        %662 = vmatprep.subr.mxu0 0.0
        %663 = vmatpush1.msra.mxu0 0.0
        %664 = vmatprep.subr.mxu0 0.0
        %665 = vmatpush1.msra.mxu0 0.0
        %666 = vmatprep.subr.mxu0 0.0
        %667 = vmatpush1.msra.mxu0 0.0
        %668 = vmatprep.subr.mxu0 0.0
        %669 = vmatpush1.msra.mxu0 0.0
        %670 = vmatprep.subr.mxu0 0.0
        %671 = vmatpush1.msra.mxu0 0.0
        %672 = vmatprep.subr.mxu0 0.0
        %673 = vmatpush1.msra.mxu0 0.0
        %674 = vmatprep.subr.mxu0 0.0
        %675 = vmatpush1.msra.mxu0 0.0
        %676 = vmatprep.subr.mxu0 0.0
        %677 = vmatpush1.msra.mxu0 0.0
        %678 = vmatprep.subr.mxu0 0.0
        %679 = vmatpush1.msra.mxu0 0.0
        %680 = vmatprep.subr.mxu0 0.0
        %681 = vmatpush1.msra.mxu0 0.0
        %682 = vmatprep.subr.mxu0 0.0
        %683 = vmatpush1.msra.mxu0 0.0
        %684 = vmatprep.mubr.f32.mxu0 0.0
        %685 = vmatmul.mubr.f32.gmra.mrb[0].mxu0 %v603
        %v686 = vpop.f32.mrb[0].mxu0
        %v687 = vadd.f32 %v584, %v686
        %v688 = vpop.f32.mrb[0].mxu0
        %v689 = vadd.f32 %v584, %v688
        %690 = vmatprep.mubr.f32.mxu0 0.0
        %691 = vmatmul.mubr.f32.gmra.mrb[0].mxu0 %v606
        %v692 = vpop.f32.mrb[0].mxu0
        %v693 = vadd.f32 %v589, %v692
        %v694 = vpop.f32.mrb[0].mxu0
        %v695 = vadd.f32 %v589, %v694
        %696 = vmatprep.mubr.f32.mxu0 0.0
        %697 = vmatmul.mubr.f32.gmra.mrb[0].mxu0 %v609
        %v698 = vpop.f32.mrb[0].mxu0
        %v699 = vadd.f32 %v594, %v698
        %v700 = vpop.f32.mrb[0].mxu0
        %v701 = vadd.f32 %v594, %v700
        %702 = vmatprep.mubr.f32.mxu0 0.0
        %703 = vmatmul.mubr.f32.gmra.mrb[0].mxu0 %v612
        %v704 = vpop.f32.mrb[0].mxu0
        %v705 = vadd.f32 %v599, %v704
        %v706 = vpop.f32.mrb[0].mxu0
        %v707 = vadd.f32 %v599, %v706
        %708 = vdwg.mxu0
        %709 = vst [vmem:[%s186] sm:$0xff] %v687
        %710 = vst [vmem:[%s186 + $0x8] sm:$0xff] %v689
        %711 = vst [vmem:[%s186 + $0x10] sm:$0xff] %v693
        %712 = vst [vmem:[%s186 + $0x18] sm:$0xff] %v695
        %713 = vst [vmem:[%s186 + $0x20] sm:$0xff] %v699
        %714 = vst [vmem:[%s186 + $0x28] sm:$0xff] %v701
        %715 = vst [vmem:[%s186 + $0x30] sm:$0xff] %v705
        %716 = vst [vmem:[%s186 + $0x38] sm:$0xff] %v707
        %s717 = sand.u32 %s96, 1
        %s718 = scalar_lea.sflag [#allocation4], %s717
        %s719 = sand.u32 %s96, 1
        %s720 = smul.addr %s719, 64
        %s721 = scalar_lea.vmem [#allocation5], %s720
        // Predicated region
        $region37: #{tpu_custom_call.1} parent=31 // pred_check
          %p722 = pneg %p106
        $region38: #{tpu_custom_call.1} parent=31 // pred_check_branch
          %724 = sbr.rel (%p722) target = $region40
        $region39: #{tpu_custom_call.1} parent=31 // pred_region
          %s726 = ssub.s32 1024, 1024
          %727 = vsyncadd %s718, %s726
          %s728 = smul.addr %s20, 8
          %s729 = smul.addr %s728, 128
          %s730 = scalar_lea.hbm %s3, %s729
          %s731 = sshll.u32 %s721, 4
          %s732 = int_to_ptr.vmem [resolvable:$true] %s731
          %737 = dma.vmem_to_hbm [thread:$0]  %s732, 1024, %s730, %s718, 256, 256, 16
        $region40: #{tpu_custom_call.1} parent=31 // pred_fallthru
          _
      $region32: #{tpu_custom_call.1} parent=5 // pred_fallthru
        _
      %p738 = scmp.le.s32.totalorder 2, %s15
      // Predicated region
      $region41: #{tpu_custom_call.1} parent=5 // pred_check
        %p739 = pneg %p738
      $region42: #{tpu_custom_call.1} parent=5 // pred_check_branch
        %741 = sbr.rel (%p739) target = $region44
      $region43: #{tpu_custom_call.1} parent=5 // pred_region
        %s742 = ssub.s32 %s15, 2
        // Predicated region
        $region45: #{tpu_custom_call.1} parent=43 // pred_check
          %p743 = pneg %p112
        $region46: #{tpu_custom_call.1} parent=43 // pred_check_branch
          %745 = sbr.rel (%p743) target = $region48
        $region47: #{tpu_custom_call.1} parent=43 // pred_region
          %s746 = sand.u32 %s97, 1
          %s747 = scalar_lea.sflag [#allocation4], %s746
          %s748 = sand.u32 %s97, 1
          %s749 = smul.addr %s748, 64
          %s750 = scalar_lea.vmem [#allocation5], %s749
          %751 = dma.done %s747, 1024
        $region48: #{tpu_custom_call.1} parent=43 // pred_fallthru
          _
      $region44: #{tpu_custom_call.1} parent=5 // pred_fallthru
        _
    $region6: #{tpu_custom_call.1} parent=1 // loop_footer
      %s19 = sadd.s32 1, %s15
    $region7: #{tpu_custom_call.1} parent=1 // loop_footer_branch
      %14 = sbr.rel target = $region3
    $region8: #{tpu_custom_call.1} parent=1 // loop_exit
      _
    %752 = vsyncpa [#allocation3], 1
    %s753 = scalar_lea.sflag [#allocation3], 1
    %754 = vsyncpa %s753, 1
    %755 = vsyncpa [#allocation4], 1
    %s756 = scalar_lea.sflag [#allocation4], 1
    %757 = vsyncpa %s756, 1

</llo_original>
